<compile_context>
chip_gen: v7x
topology: tpu7x:2x2x1
jax: 0.10.0
libtpu: 0.0.40
codegen_flags: <defaults>
</compile_context>

<pallas_src>
import jax
import jax.numpy as jnp
from jax.experimental import pallas as pl
from jax.experimental.pallas import tpu as pltpu


def _round_up(x, m):
    return ((x + m - 1) // m) * m


def _pick_tile(requested, total, min_steps=1):
    """Largest multiple of 128 that divides `total`, is <= `requested`, and
    (if possible) leaves at least `min_steps` grid steps along that axis."""
    cap = min(requested, total)
    divisors = [t for t in range(128, cap + 1, 128) if total % t == 0]
    ok = [t for t in divisors if total // t >= min_steps]
    return max(ok) if ok else max(divisors)


# ----------------------------------------------------------------------------
# Fused kernel:  acc += A[i,k] @ (X[k] @ W);  last k: out = PReLU(acc + b)
# Grid = (row tiles [parallel], K tiles [arbitrary, last]).
# ----------------------------------------------------------------------------
def encoder_kernel(a_ref, x_ref, w_ref, b_ref, alpha_ref, o_ref, acc_ref):
    k = pl.program_id(1)

    @pl.when(k == 0)
    def _():
        acc_ref[...] = jnp.zeros_like(acc_ref)

    a = a_ref[...]                                            # [tm, tk] (a_dtype)
    # XW block fused into the reduction (K = cin is tiny, so the recompute per
    # row tile costs ~cin/tm of total FLOPs and deletes the XW HBM round trip).
    xw = jnp.dot(x_ref[...], w_ref[...], preferred_element_type=jnp.float32)
    xw = xw.astype(a.dtype)          # bf16 operands -> native MXU; no-op if f32
    acc_ref[...] += jnp.dot(a, xw, preferred_element_type=jnp.float32)

    @pl.when(k == pl.num_programs(1) - 1)
    def _():
        h = acc_ref[...] + b_ref[...]                 # bias broadcast (VPU)
        o_ref[...] = jnp.where(h > 0, h, alpha_ref[...] * h).astype(o_ref.dtype)


# ----------------------------------------------------------------------------
# Wrapper
# ----------------------------------------------------------------------------
def encoder_forward(a_hat, x, w, b, alpha, *, tm=512, tk=512,
                    a_dtype=jnp.bfloat16, a_buffers=2):
    """Fused GCNConv + PReLU forward.

    a_hat : [N, N] or [n_pad, n_pad] normalized dense adjacency
            (pass it already padded + in a_dtype to avoid an extra HBM pass)
    x     : [N, Cin] node features
    w     : [Cin, H] GCN weight
    b     : [1, H]   GCN bias
    alpha : [1, H]   PReLU per-channel slope
    returns [N, H] float32
    """
    n, cin = x.shape
    hdim = w.shape[1]
    f32 = jnp.float32

    h_pad = _round_up(hdim, 128)          # lane-dense output (unmasked vst)
    cin_pad = _round_up(cin, 8)
    n_pad = _round_up(n, 128)             # rows padded only to 128, not tm

    tm_eff = _pick_tile(tm, n_pad, min_steps=2)   # >=2 row steps -> v7x megacore
    tk_eff = _pick_tile(tk, n_pad, min_steps=1)

    # A_hat: zero-copy if already padded in the right dtype.
    if a_hat.shape == (n_pad, n_pad):
        a_p = a_hat if a_hat.dtype == a_dtype else a_hat.astype(a_dtype)
    else:
        a_p = jnp.zeros((n_pad, n_pad), a_dtype).at[:n, :n].set(
            a_hat.astype(a_dtype))

    x_p = jnp.zeros((n_pad, cin_pad), f32).at[:n, :cin].set(x)
    w_p = jnp.zeros((cin_pad, h_pad), f32).at[:cin, :hdim].set(w)
    b_p = jnp.zeros((1, h_pad), f32).at[:, :hdim].set(b)
    al_p = jnp.zeros((1, h_pad), f32).at[:, :hdim].set(alpha)

    grid = (n_pad // tm_eff, n_pad // tk_eff)
    itemsize_a = jnp.dtype(a_dtype).itemsize

    # Explicit, N-independent per-step VMEM accounting.
    bytes_per_step = (
        a_buffers * tm_eff * tk_eff * itemsize_a   # A tile buffers
        + 2 * tk_eff * cin_pad * 4                 # X tile (double-buffered)
        + 2 * cin_pad * h_pad * 4                  # W (resident; x2 for safety)
        + 2 * 2 * h_pad * 4                        # bias + alpha
        + 2 * tm_eff * h_pad * 4                   # out tile (double-buffered)
        + tm_eff * h_pad * 4                       # f32 accumulator scratch
    )
    # Cap at 48 MiB: leaves headroom on v7x (64 MiB/TC); harmless elsewhere.
    vmem_limit = int(min(max(int(1.5 * bytes_per_step) + (2 << 20), 8 << 20),
                         48 << 20))

    row_steps = n_pad // tm_eff
    flops = 2 * n_pad * n_pad * h_pad + row_steps * 2 * n_pad * cin_pad * h_pad
    bytes_accessed = (n_pad * n_pad * itemsize_a            # A_hat streamed once
                      + row_steps * n_pad * cin_pad * 4     # X re-read / row tile
                      + n_pad * h_pad * 4                   # output
                      + cin_pad * h_pad * 4 + 2 * h_pad * 4)

    a_spec_kw = {} if a_buffers == 2 else {"pipeline_mode": pl.Buffered(a_buffers)}

    out_p = pl.pallas_call(
        encoder_kernel,
        out_shape=jax.ShapeDtypeStruct((n_pad, h_pad), f32),
        grid_spec=pltpu.PrefetchScalarGridSpec(
            num_scalar_prefetch=0,
            grid=grid,
            in_specs=[
                pl.BlockSpec((tm_eff, tk_eff), lambda i, k: (i, k), **a_spec_kw),
                pl.BlockSpec((tk_eff, cin_pad), lambda i, k: (k, 0)),
                pl.BlockSpec((cin_pad, h_pad), lambda i, k: (0, 0)),
                pl.BlockSpec((1, h_pad), lambda i, k: (0, 0)),
                pl.BlockSpec((1, h_pad), lambda i, k: (0, 0)),
            ],
            out_specs=pl.BlockSpec((tm_eff, h_pad), lambda i, k: (i, 0)),
            scratch_shapes=[pltpu.VMEM((tm_eff, h_pad), jnp.float32)],
        ),
        compiler_params=pltpu.CompilerParams(
            dimension_semantics=("parallel", "arbitrary"),
            vmem_limit_bytes=vmem_limit,
        ),
        cost_estimate=pl.CostEstimate(
            flops=int(flops), transcendentals=0,
            bytes_accessed=int(bytes_accessed)),
    )(a_p, x_p, w_p, b_p, al_p)

    return out_p[:n, :hdim]


# ----------------------------------------------------------------------------
# Glue: dense symmetric-normalized adjacency (PyG GCNConv normalization),
# built directly padded to n_pad and in the kernel's A dtype so no second
# full-N^2 pad/cast pass over HBM is needed.  Diagonal forced to exactly 1 so
# graphs that already contain self-loops match add_remaining_self_loops.
# ----------------------------------------------------------------------------
def gcn_norm_dense(edge_index, num_nodes, *, n_pad=None, dtype=jnp.float32):
    if n_pad is None:
        n_pad = _round_up(num_nodes, 128)
    src = edge_index[0]
    dst = edge_index[1]
    a = jnp.zeros((n_pad, n_pad), dtype=jnp.float32)
    a = a.at[dst, src].set(1.0)                      # aggregation row = dst
    diag = jnp.arange(num_nodes)
    a = a.at[diag, diag].set(1.0)                    # self-loops (exactly 1)
    deg = jnp.sum(a, axis=1)
    d_inv_sqrt = jnp.where(deg > 0, 1.0 / jnp.sqrt(deg), 0.0)
    return (d_inv_sqrt[:, None] * a * d_inv_sqrt[None, :]).astype(dtype)


# ----------------------------------------------------------------------------
# Pure-JAX reference
# ----------------------------------------------------------------------------
def encoder_ref(a_hat, x, w, b, alpha):
    h = a_hat @ (x @ w) + b
    return jnp.where(h > 0, h, alpha * h)


if __name__ == "__main__":
    key = jax.random.PRNGKey(0)

    num_nodes = 16
    in_channels = 8
    hidden_channels = 32

    k_x, k_w, k_e = jax.random.split(key, 3)

    # Node features
    x = jax.random.normal(k_x, (num_nodes, in_channels), dtype=jnp.float32)

    # Deterministic edge_index: undirected ring + a few chords  (shape [2, E])
    ring_src = jnp.arange(num_nodes)
    ring_dst = (ring_src + 1) % num_nodes
    chord_src = jnp.arange(0, num_nodes, 4)
    chord_dst = (chord_src + num_nodes // 2) % num_nodes
    src = jnp.concatenate([ring_src, ring_dst, chord_src, chord_dst])
    dst = jnp.concatenate([ring_dst, ring_src, chord_dst, chord_src])
    edge_index = jnp.stack([src, dst]).astype(jnp.int32)

    # Parameters (glorot-like W, zero bias, PReLU slope 0.25 = torch default)
    limit = (6.0 / (in_channels + hidden_channels)) ** 0.5
    w = jax.random.uniform(
        k_w, (in_channels, hidden_channels), minval=-limit, maxval=limit,
        dtype=jnp.float32)
    b = jnp.zeros((1, hidden_channels), dtype=jnp.float32)
    alpha = jnp.full((1, hidden_channels), 0.25, dtype=jnp.float32)

    # cached=True in the module => normalization computed once (here: padded,
    # in both dtypes so each kernel path gets a zero-copy A_hat).
    n_pad = _round_up(num_nodes, 128)
    a_hat_f32 = gcn_norm_dense(edge_index, num_nodes, n_pad=n_pad,
                               dtype=jnp.float32)
    a_hat_bf16 = gcn_norm_dense(edge_index, num_nodes, n_pad=n_pad,
                                dtype=jnp.bfloat16)

    ref = encoder_ref(a_hat_f32[:num_nodes, :num_nodes], x, w, b, alpha)

    # 1) f32 path: bit-close to the reference (validates exact semantics).
    out_f32 = encoder_forward(a_hat_f32, x, w, b, alpha, a_dtype=jnp.float32)
    out_f32 = jax.block_until_ready(out_f32)
    assert out_f32.shape == (num_nodes, hidden_channels)
    assert jnp.allclose(out_f32, ref, atol=1e-5, rtol=1e-5)

    # 2) default bf16 path: HBM-optimized; looser tolerance (bf16 operands,
    #    f32 accumulation).
    out_bf16 = encoder_forward(a_hat_bf16, x, w, b, alpha)
    out_bf16 = jax.block_until_ready(out_bf16)
    assert out_bf16.shape == (num_nodes, hidden_channels)
    assert jnp.allclose(out_bf16, ref, atol=2e-2, rtol=2e-2)

    print("KERNEL_OK")
</pallas_src>

<mosaic_0001>
module attributes {stable_mosaic.version = 11 : i64} {
  func.func @encoder_kernel(%arg0: i32, %arg1: i32, %arg2: memref<128x128xf32, #tpu.memory_space<vmem>>, %arg3: memref<128x8xf32, #tpu.memory_space<vmem>>, %arg4: memref<8x128xf32, #tpu.memory_space<vmem>>, %arg5: memref<1x128xf32, #tpu.memory_space<vmem>>, %arg6: memref<1x128xf32, #tpu.memory_space<vmem>>, %arg7: memref<128x128xf32, #tpu.memory_space<vmem>>, %arg8: memref<128x128xf32, #tpu.memory_space<vmem>>) attributes {dimension_semantics = [#tpu.dimension_semantics<parallel>, #tpu.dimension_semantics<arbitrary>], iteration_bounds = array<i64: 1, 1>, scalar_prefetch = 0 : i64, scratch_operands = 1 : i64, tpu.core_type = #tpu.core_type<tc>, window_params = [{transform_indices = @transform_0, window_bounds = array<i64: 128, 128>}, {transform_indices = @transform_1, window_bounds = array<i64: 128, 8>}, {pipeline_mode = #tpu.pipeline_mode<synchronous>, transform_indices = @transform_2, window_bounds = array<i64: 8, 128>}, {pipeline_mode = #tpu.pipeline_mode<synchronous>, transform_indices = @transform_3, window_bounds = array<i64: 1, 128>}, {pipeline_mode = #tpu.pipeline_mode<synchronous>, transform_indices = @transform_4, window_bounds = array<i64: 1, 128>}, {transform_indices = @transform_5, window_bounds = array<i64: 128, 128>}]} {
    %c0_i32 = arith.constant 0 : i32
    %0 = arith.cmpi eq, %arg1, %c0_i32 : i32
    %1 = arith.extui %0 : i1 to i32
    %c0_i32_0 = arith.constant 0 : i32
    %2 = arith.cmpi ne, %1, %c0_i32_0 : i32
    scf.if %2 {
      %cst_13 = arith.constant 0.000000e+00 : f32
      %14 = vector.broadcast %cst_13 : f32 to vector<128x128xf32>
      %c0_14 = arith.constant 0 : index
      %c0_15 = arith.constant 0 : index
      %15 = vector.load %arg8[%c0_14, %c0_15] : memref<128x128xf32, #tpu.memory_space<vmem>>, vector<128x128xf32>
      tpu.vector_store %arg8[%c0_14, %c0_15], %14 {strides = array<i32>} : memref<128x128xf32, #tpu.memory_space<vmem>>, vector<128x128xf32>,
    } else {
    }
    %c0 = arith.constant 0 : index
    %c0_1 = arith.constant 0 : index
    %3 = vector.load %arg2[%c0, %c0_1] : memref<128x128xf32, #tpu.memory_space<vmem>>, vector<128x128xf32>
    %c0_2 = arith.constant 0 : index
    %c0_3 = arith.constant 0 : index
    %4 = vector.load %arg3[%c0_2, %c0_3] : memref<128x8xf32, #tpu.memory_space<vmem>>, vector<128x8xf32>
    %c0_4 = arith.constant 0 : index
    %c0_5 = arith.constant 0 : index
    %5 = vector.load %arg4[%c0_4, %c0_5] : memref<8x128xf32, #tpu.memory_space<vmem>>, vector<8x128xf32>
    %cst = arith.constant dense<0.000000e+00> : vector<128x128xf32>
    %6 = tpu.matmul %4, %5, %cst {dimension_numbers = #tpu.dot_dimension_numbers<[1], [0], [0], [1], [0, 0, 1, 1], [], []>} : vector<128x8xf32>, vector<8x128xf32>, vector<128x128xf32> -> vector<128x128xf32>
    %c0_6 = arith.constant 0 : index
    %c0_7 = arith.constant 0 : index
    %7 = vector.load %arg8[%c0_6, %c0_7] : memref<128x128xf32, #tpu.memory_space<vmem>>, vector<128x128xf32>
    %cst_8 = arith.constant dense<0.000000e+00> : vector<128x128xf32>
    %8 = tpu.matmul %3, %6, %cst_8 {dimension_numbers = #tpu.dot_dimension_numbers<[1], [0], [0], [1], [0, 0, 1, 1], [], []>} : vector<128x128xf32>, vector<128x128xf32>, vector<128x128xf32> -> vector<128x128xf32>
    %9 = arith.addf %7, %8 : vector<128x128xf32>
    %c0_9 = arith.constant 0 : index
    %c0_10 = arith.constant 0 : index
    %10 = vector.load %arg8[%c0_9, %c0_10] : memref<128x128xf32, #tpu.memory_space<vmem>>, vector<128x128xf32>
    tpu.vector_store %arg8[%c0_9, %c0_10], %9 {strides = array<i32>} : memref<128x128xf32, #tpu.memory_space<vmem>>, vector<128x128xf32>,
    %c0_i32_11 = arith.constant 0 : i32
    %11 = arith.cmpi eq, %arg1, %c0_i32_11 : i32
    %12 = arith.extui %11 : i1 to i32
    %c0_i32_12 = arith.constant 0 : i32
    %13 = arith.cmpi ne, %12, %c0_i32_12 : i32
    scf.if %13 {
      %c0_13 = arith.constant 0 : index
      %c0_14 = arith.constant 0 : index
      %14 = vector.load %arg8[%c0_13, %c0_14] : memref<128x128xf32, #tpu.memory_space<vmem>>, vector<128x128xf32>
      %c0_15 = arith.constant 0 : index
      %c0_16 = arith.constant 0 : index
      %15 = vector.load %arg5[%c0_15, %c0_16] : memref<1x128xf32, #tpu.memory_space<vmem>>, vector<1x128xf32>
      %16 = vector.broadcast %15 : vector<1x128xf32> to vector<128x128xf32>
      %17 = arith.addf %14, %16 : vector<128x128xf32>
      %cst_17 = arith.constant 0.000000e+00 : f32
      %18 = vector.broadcast %cst_17 : f32 to vector<128x128xf32>
      %19 = arith.cmpf ogt, %17, %18 : vector<128x128xf32>
      %c0_18 = arith.constant 0 : index
      %c0_19 = arith.constant 0 : index
      %20 = vector.load %arg6[%c0_18, %c0_19] : memref<1x128xf32, #tpu.memory_space<vmem>>, vector<1x128xf32>
      %21 = vector.broadcast %20 : vector<1x128xf32> to vector<128x128xf32>
      %22 = arith.mulf %21, %17 : vector<128x128xf32>
      %23 = arith.select %19, %17, %22 : vector<128x128xi1>, vector<128x128xf32>
      %c0_20 = arith.constant 0 : index
      %c0_21 = arith.constant 0 : index
      %24 = vector.load %arg7[%c0_20, %c0_21] : memref<128x128xf32, #tpu.memory_space<vmem>>, vector<128x128xf32>
      tpu.vector_store %arg7[%c0_20, %c0_21], %23 {strides = array<i32>} : memref<128x128xf32, #tpu.memory_space<vmem>>, vector<128x128xf32>,
    } else {
    }
    return
  }
  func.func @transform_0(%arg0: i32, %arg1: i32) -> (i32, i32) {
    %c0_i32 = arith.constant 0 : i32
    return %arg0, %arg1 : i32, i32
  }
  func.func @transform_1(%arg0: i32, %arg1: i32) -> (i32, i32) {
    %c0_i32 = arith.constant 0 : i32
    %c0_i32_0 = arith.constant 0 : i32
    return %arg1, %c0_i32 : i32, i32
  }
  func.func @transform_2(%arg0: i32, %arg1: i32) -> (i32, i32) {
    %c0_i32 = arith.constant 0 : i32
    %c0_i32_0 = arith.constant 0 : i32
    %c0_i32_1 = arith.constant 0 : i32
    return %c0_i32, %c0_i32_0 : i32, i32
  }
  func.func @transform_3(%arg0: i32, %arg1: i32) -> (i32, i32) {
    %c0_i32 = arith.constant 0 : i32
    %c0_i32_0 = arith.constant 0 : i32
    %c0_i32_1 = arith.constant 0 : i32
    return %c0_i32, %c0_i32_0 : i32, i32
  }
  func.func @transform_4(%arg0: i32, %arg1: i32) -> (i32, i32) {
    %c0_i32 = arith.constant 0 : i32
    %c0_i32_0 = arith.constant 0 : i32
    %c0_i32_1 = arith.constant 0 : i32
    return %c0_i32, %c0_i32_0 : i32, i32
  }
  func.func @transform_5(%arg0: i32, %arg1: i32) -> (i32, i32) {
    %c0_i32 = arith.constant 0 : i32
    %c0_i32_0 = arith.constant 0 : i32
    return %arg0, %c0_i32 : i32, i32
  }
}

</mosaic_0001>

<llo_original>
// kernel: tpu_custom_call.1
$region0: #{tpu_custom_call.1}
  #allocation0 [shape = 'u32[]', space=smem, size = 0x4, offset = 0x4, fixed_abs, tag = 'smem constant byte address 0x4 - core index']
  #allocation1 [shape = 'u32[144,128]{1,0:T(1,128)}', space=vmem, size = 0x12000, scoped, tag = 'internal scratch']
  #allocation2 [shape = 'f32[128,128]{1,0:T(8,128)}', space=vmem, size = 0x10000, scoped, tag = 'scratch operand']
  %s0 = inlined_call_operand.vmem [shape: f32[128,128], index: 0, kind: input, shape index: {}]
  %s1 = inlined_call_operand.vmem [shape: f32[128,8], index: 1, kind: input, shape index: {}]
  %s2 = inlined_call_operand.vmem [shape: f32[8,128], index: 2, kind: input, shape index: {}]
  %s3 = inlined_call_operand.vmem [shape: f32[1,128], index: 3, kind: input, shape index: {}]
  %s4 = inlined_call_operand.vmem [shape: f32[1,128], index: 4, kind: input, shape index: {}]
  %s5 = inlined_call_operand.hbm [shape: f32[128,128], index: 5, kind: output, shape index: {}]
  %s6 = sld [smem:[#allocation0]]
  $region38: #{tpu_custom_call.1} parent=0
    _
  %s8 = ssub.s32 1, %s6
  %s9 = scalar_select 0, %s8, %s6
  $region1: #{tpu_custom_call.1} parent=0
    #allocation3 [shape = 'u8[65536]{0}', space=vmem, size = 0x10000, scoped, tag = 'output window, operand 0, single buffered']
    #allocation4 [shape = 's32[1]{0}', space=sflag, size = 0x4, scoped, tag = 'scoped memory for tpu_custom_call.1']
    %10 = vsyncpa [#allocation4], 0
    // Predicated region
    $region2: #{tpu_custom_call.1} parent=1 // pred_check
      _
    $region3: #{tpu_custom_call.1} parent=1 // pred_check_branch
      %12 = sbr.rel (0) target = $region5
    $region4: #{tpu_custom_call.1} parent=1 // pred_region
      _
    $region5: #{tpu_custom_call.1} parent=1 // pred_fallthru
      _
    // Predicated region
    $region6: #{tpu_custom_call.1} parent=1 // pred_check
      _
    $region7: #{tpu_custom_call.1} parent=1 // pred_check_branch
      %14 = sbr.rel (0) target = $region9
    $region8: #{tpu_custom_call.1} parent=1 // pred_region
      _
    $region9: #{tpu_custom_call.1} parent=1 // pred_fallthru
      _
    // Predicated region
    $region10: #{tpu_custom_call.1} parent=1 // pred_check
      _
    $region11: #{tpu_custom_call.1} parent=1 // pred_check_branch
      %16 = sbr.rel (0) target = $region13
    $region12: #{tpu_custom_call.1} parent=1 // pred_region
      _
    $region13: #{tpu_custom_call.1} parent=1 // pred_fallthru
      _
    // Predicated region
    $region14: #{tpu_custom_call.1} parent=1 // pred_check
      _
    $region15: #{tpu_custom_call.1} parent=1 // pred_check_branch
      %18 = sbr.rel (0) target = $region17
    $region16: #{tpu_custom_call.1} parent=1 // pred_region
      _
    $region17: #{tpu_custom_call.1} parent=1 // pred_fallthru
      _
    // Predicated region
    $region18: #{tpu_custom_call.1} parent=1 // pred_check
      _
    $region19: #{tpu_custom_call.1} parent=1 // pred_check_branch
      %20 = sbr.rel (0) target = $region21
    $region20: #{tpu_custom_call.1} parent=1 // pred_region
      _
    $region21: #{tpu_custom_call.1} parent=1 // pred_fallthru
      _
    %p21 = scmp.eq.s32.totalorder 0, 0
    // Predicated region
    $region22: #{tpu_custom_call.1} parent=1 // pred_check
      %p22 = pneg %p21
    $region23: #{tpu_custom_call.1} parent=1 // pred_check_branch
      %24 = sbr.rel (%p22) target = $region25
    $region24: #{tpu_custom_call.1} parent=1 // pred_region
      %25 = vst [vmem:[#allocation2] sm:$0xff] 0.0
      %26 = vst [vmem:[#allocation2 + $0x8] sm:$0xff] 0.0
      %27 = vst [vmem:[#allocation2 + $0x10] sm:$0xff] 0.0
      %28 = vst [vmem:[#allocation2 + $0x18] sm:$0xff] 0.0
      %29 = vst [vmem:[#allocation2 + $0x20] sm:$0xff] 0.0
      %30 = vst [vmem:[#allocation2 + $0x28] sm:$0xff] 0.0
      %31 = vst [vmem:[#allocation2 + $0x30] sm:$0xff] 0.0
      %32 = vst [vmem:[#allocation2 + $0x38] sm:$0xff] 0.0
      %33 = vst [vmem:[#allocation2 + $0x40] sm:$0xff] 0.0
      %34 = vst [vmem:[#allocation2 + $0x48] sm:$0xff] 0.0
      %35 = vst [vmem:[#allocation2 + $0x50] sm:$0xff] 0.0
      %36 = vst [vmem:[#allocation2 + $0x58] sm:$0xff] 0.0
      %37 = vst [vmem:[#allocation2 + $0x60] sm:$0xff] 0.0
      %38 = vst [vmem:[#allocation2 + $0x68] sm:$0xff] 0.0
      %39 = vst [vmem:[#allocation2 + $0x70] sm:$0xff] 0.0
      %40 = vst [vmem:[#allocation2 + $0x78] sm:$0xff] 0.0
    $region25: #{tpu_custom_call.1} parent=1 // pred_fallthru
      _
    %v41 = vld [vmem:[%s0] sm:$0xff]
    %v42 = vld [vmem:[%s0 + $0x8] sm:$0xff]
    %v43 = vld [vmem:[%s0 + $0x10] sm:$0xff]
    %v44 = vld [vmem:[%s0 + $0x18] sm:$0xff]
    %v45 = vld [vmem:[%s0 + $0x20] sm:$0xff]
    %v46 = vld [vmem:[%s0 + $0x28] sm:$0xff]
    %v47 = vld [vmem:[%s0 + $0x30] sm:$0xff]
    %v48 = vld [vmem:[%s0 + $0x38] sm:$0xff]
    %v49 = vld [vmem:[%s0 + $0x40] sm:$0xff]
    %v50 = vld [vmem:[%s0 + $0x48] sm:$0xff]
    %v51 = vld [vmem:[%s0 + $0x50] sm:$0xff]
    %v52 = vld [vmem:[%s0 + $0x58] sm:$0xff]
    %v53 = vld [vmem:[%s0 + $0x60] sm:$0xff]
    %v54 = vld [vmem:[%s0 + $0x68] sm:$0xff]
    %v55 = vld [vmem:[%s0 + $0x70] sm:$0xff]
    %v56 = vld [vmem:[%s0 + $0x78] sm:$0xff]
    %v57 = vld [vmem:[%s1] sm:$0xff]
    %v58 = vld [vmem:[%s1 + $0x8] sm:$0xff]
    %v59 = vld [vmem:[%s1 + $0x10] sm:$0xff]
    %v60 = vld [vmem:[%s1 + $0x18] sm:$0xff]
    %v61 = vld [vmem:[%s1 + $0x20] sm:$0xff]
    %v62 = vld [vmem:[%s1 + $0x28] sm:$0xff]
    %v63 = vld [vmem:[%s1 + $0x30] sm:$0xff]
    %v64 = vld [vmem:[%s1 + $0x38] sm:$0xff]
    %v65 = vld [vmem:[%s1 + $0x40] sm:$0xff]
    %v66 = vld [vmem:[%s1 + $0x48] sm:$0xff]
    %v67 = vld [vmem:[%s1 + $0x50] sm:$0xff]
    %v68 = vld [vmem:[%s1 + $0x58] sm:$0xff]
    %v69 = vld [vmem:[%s1 + $0x60] sm:$0xff]
    %v70 = vld [vmem:[%s1 + $0x68] sm:$0xff]
    %v71 = vld [vmem:[%s1 + $0x70] sm:$0xff]
    %v72 = vld [vmem:[%s1 + $0x78] sm:$0xff]
    %v73 = vld [vmem:[%s2] sm:$0xff]
    %vm74 = vcmask 64512
    %v76 = vsel %vm74, %v57, 0
    %v79 = vsel %vm74, %v58, 0
    %v82 = vsel %vm74, %v59, 0
    %v85 = vsel %vm74, %v60, 0
    %v88 = vsel %vm74, %v61, 0
    %v91 = vsel %vm74, %v62, 0
    %v94 = vsel %vm74, %v63, 0
    %v97 = vsel %vm74, %v64, 0
    %v100 = vsel %vm74, %v65, 0
    %v103 = vsel %vm74, %v66, 0
    %v106 = vsel %vm74, %v67, 0
    %v109 = vsel %vm74, %v68, 0
    %v112 = vsel %vm74, %v69, 0
    %v115 = vsel %vm74, %v70, 0
    %v118 = vsel %vm74, %v71, 0
    %v121 = vsel %vm74, %v72, 0
    %123 = vmatprep.subr.mxu0 0.0
    %124 = vmatpush1.msra.mxu0 %v73
    %125 = vmatprep.subr.mxu0 0.0
    %126 = vmatpush1.msra.mxu0 0.0
    %127 = vmatprep.subr.mxu0 0.0
    %128 = vmatpush1.msra.mxu0 0.0
    %129 = vmatprep.subr.mxu0 0.0
    %130 = vmatpush1.msra.mxu0 0.0
    %131 = vmatprep.subr.mxu0 0.0
    %132 = vmatpush1.msra.mxu0 0.0
    %133 = vmatprep.subr.mxu0 0.0
    %134 = vmatpush1.msra.mxu0 0.0
    %135 = vmatprep.subr.mxu0 0.0
    %136 = vmatpush1.msra.mxu0 0.0
    %137 = vmatprep.subr.mxu0 0.0
    %138 = vmatpush1.msra.mxu0 0.0
    %139 = vmatprep.subr.mxu0 0.0
    %140 = vmatpush1.msra.mxu0 0.0
    %141 = vmatprep.subr.mxu0 0.0
    %142 = vmatpush1.msra.mxu0 0.0
    %143 = vmatprep.subr.mxu0 0.0
    %144 = vmatpush1.msra.mxu0 0.0
    %145 = vmatprep.subr.mxu0 0.0
    %146 = vmatpush1.msra.mxu0 0.0
    %147 = vmatprep.subr.mxu0 0.0
    %148 = vmatpush1.msra.mxu0 0.0
    %149 = vmatprep.subr.mxu0 0.0
    %150 = vmatpush1.msra.mxu0 0.0
    %151 = vmatprep.subr.mxu0 0.0
    %152 = vmatpush1.msra.mxu0 0.0
    %153 = vmatprep.subr.mxu0 0.0
    %154 = vmatpush1.msra.mxu0 0.0
    %155 = vmatprep.subr.mxu0 0.0
    %156 = vmatpush1.msra.mxu0 0.0
    %157 = vmatprep.subr.mxu0 0.0
    %158 = vmatpush1.msra.mxu0 0.0
    %159 = vmatprep.subr.mxu0 0.0
    %160 = vmatpush1.msra.mxu0 0.0
    %161 = vmatprep.subr.mxu0 0.0
    %162 = vmatpush1.msra.mxu0 0.0
    %163 = vmatprep.subr.mxu0 0.0
    %164 = vmatpush1.msra.mxu0 0.0
    %165 = vmatprep.subr.mxu0 0.0
    %166 = vmatpush1.msra.mxu0 0.0
    %167 = vmatprep.subr.mxu0 0.0
    %168 = vmatpush1.msra.mxu0 0.0
    %169 = vmatprep.subr.mxu0 0.0
    %170 = vmatpush1.msra.mxu0 0.0
    %171 = vmatprep.subr.mxu0 0.0
    %172 = vmatpush1.msra.mxu0 0.0
    %173 = vmatprep.subr.mxu0 0.0
    %174 = vmatpush1.msra.mxu0 0.0
    %175 = vmatprep.subr.mxu0 0.0
    %176 = vmatpush1.msra.mxu0 0.0
    %177 = vmatprep.subr.mxu0 0.0
    %178 = vmatpush1.msra.mxu0 0.0
    %179 = vmatprep.subr.mxu0 0.0
    %180 = vmatpush1.msra.mxu0 0.0
    %181 = vmatprep.subr.mxu0 0.0
    %182 = vmatpush1.msra.mxu0 0.0
    %183 = vmatprep.subr.mxu0 0.0
    %184 = vmatpush1.msra.mxu0 0.0
    %185 = vmatprep.subr.mxu0 0.0
    %186 = vmatpush1.msra.mxu0 0.0
    %187 = vmatprep.mubr.f32.mxu0 0.0
    %188 = vmatmul.mubr.f32.gmra.mrb[0].mxu0 %v76
    %v189 = vpop.f32.mrb[0].mxu0
    %v190 = vadd.f32 0.0, %v189
    %v191 = vpop.f32.mrb[0].mxu0
    %192 = vmatprep.mubr.f32.mxu0 0.0
    %193 = vmatmul.mubr.f32.gmra.mrb[0].mxu0 %v79
    %v194 = vpop.f32.mrb[0].mxu0
    %v195 = vadd.f32 0.0, %v194
    %v196 = vpop.f32.mrb[0].mxu0
    %197 = vmatprep.mubr.f32.mxu0 0.0
    %198 = vmatmul.mubr.f32.gmra.mrb[0].mxu0 %v82
    %v199 = vpop.f32.mrb[0].mxu0
    %v200 = vadd.f32 0.0, %v199
    %v201 = vpop.f32.mrb[0].mxu0
    %202 = vmatprep.mubr.f32.mxu0 0.0
    %203 = vmatmul.mubr.f32.gmra.mrb[0].mxu0 %v85
    %v204 = vpop.f32.mrb[0].mxu0
    %v205 = vadd.f32 0.0, %v204
    %v206 = vpop.f32.mrb[0].mxu0
    %207 = vmatprep.mubr.f32.mxu0 0.0
    %208 = vmatmul.mubr.f32.gmra.mrb[0].mxu0 %v88
    %v209 = vpop.f32.mrb[0].mxu0
    %v210 = vadd.f32 0.0, %v209
    %v211 = vpop.f32.mrb[0].mxu0
    %212 = vmatprep.mubr.f32.mxu0 0.0
    %213 = vmatmul.mubr.f32.gmra.mrb[0].mxu0 %v91
    %v214 = vpop.f32.mrb[0].mxu0
    %v215 = vadd.f32 0.0, %v214
    %v216 = vpop.f32.mrb[0].mxu0
    %217 = vmatprep.mubr.f32.mxu0 0.0
    %218 = vmatmul.mubr.f32.gmra.mrb[0].mxu0 %v94
    %v219 = vpop.f32.mrb[0].mxu0
    %v220 = vadd.f32 0.0, %v219
    %v221 = vpop.f32.mrb[0].mxu0
    %222 = vmatprep.mubr.f32.mxu0 0.0
    %223 = vmatmul.mubr.f32.gmra.mrb[0].mxu0 %v97
    %v224 = vpop.f32.mrb[0].mxu0
    %v225 = vadd.f32 0.0, %v224
    %v226 = vpop.f32.mrb[0].mxu0
    %227 = vmatprep.mubr.f32.mxu0 0.0
    %228 = vmatmul.mubr.f32.gmra.mrb[0].mxu0 %v100
    %v229 = vpop.f32.mrb[0].mxu0
    %v230 = vadd.f32 0.0, %v229
    %v231 = vpop.f32.mrb[0].mxu0
    %232 = vmatprep.mubr.f32.mxu0 0.0
    %233 = vmatmul.mubr.f32.gmra.mrb[0].mxu0 %v103
    %v234 = vpop.f32.mrb[0].mxu0
    %v235 = vadd.f32 0.0, %v234
    %v236 = vpop.f32.mrb[0].mxu0
    %237 = vmatprep.mubr.f32.mxu0 0.0
    %238 = vmatmul.mubr.f32.gmra.mrb[0].mxu0 %v106
    %v239 = vpop.f32.mrb[0].mxu0
    %v240 = vadd.f32 0.0, %v239
    %v241 = vpop.f32.mrb[0].mxu0
    %242 = vmatprep.mubr.f32.mxu0 0.0
    %243 = vmatmul.mubr.f32.gmra.mrb[0].mxu0 %v109
    %v244 = vpop.f32.mrb[0].mxu0
    %v245 = vadd.f32 0.0, %v244
    %v246 = vpop.f32.mrb[0].mxu0
    %247 = vmatprep.mubr.f32.mxu0 0.0
    %248 = vmatmul.mubr.f32.gmra.mrb[0].mxu0 %v112
    %v249 = vpop.f32.mrb[0].mxu0
    %v250 = vadd.f32 0.0, %v249
    %v251 = vpop.f32.mrb[0].mxu0
    %252 = vmatprep.mubr.f32.mxu0 0.0
    %253 = vmatmul.mubr.f32.gmra.mrb[0].mxu0 %v115
    %v254 = vpop.f32.mrb[0].mxu0
    %v255 = vadd.f32 0.0, %v254
    %v256 = vpop.f32.mrb[0].mxu0
    %257 = vmatprep.mubr.f32.mxu0 0.0
    %258 = vmatmul.mubr.f32.gmra.mrb[0].mxu0 %v118
    %v259 = vpop.f32.mrb[0].mxu0
    %v260 = vadd.f32 0.0, %v259
    %v261 = vpop.f32.mrb[0].mxu0
    %262 = vmatprep.mubr.f32.mxu0 0.0
    %263 = vmatmul.mubr.f32.gmra.mrb[0].mxu0 %v121
    %v264 = vpop.f32.mrb[0].mxu0
    %v265 = vadd.f32 0.0, %v264
    %v266 = vpop.f32.mrb[0].mxu0
    %267 = vdwg.mxu0
    %v268 = vld [vmem:[#allocation2] sm:$0xff]
    %v269 = vld [vmem:[#allocation2 + $0x8] sm:$0xff]
    %v270 = vld [vmem:[#allocation2 + $0x10] sm:$0xff]
    %v271 = vld [vmem:[#allocation2 + $0x18] sm:$0xff]
    %v272 = vld [vmem:[#allocation2 + $0x20] sm:$0xff]
    %v273 = vld [vmem:[#allocation2 + $0x28] sm:$0xff]
    %v274 = vld [vmem:[#allocation2 + $0x30] sm:$0xff]
    %v275 = vld [vmem:[#allocation2 + $0x38] sm:$0xff]
    %v276 = vld [vmem:[#allocation2 + $0x40] sm:$0xff]
    %v277 = vld [vmem:[#allocation2 + $0x48] sm:$0xff]
    %v278 = vld [vmem:[#allocation2 + $0x50] sm:$0xff]
    %v279 = vld [vmem:[#allocation2 + $0x58] sm:$0xff]
    %v280 = vld [vmem:[#allocation2 + $0x60] sm:$0xff]
    %v281 = vld [vmem:[#allocation2 + $0x68] sm:$0xff]
    %v282 = vld [vmem:[#allocation2 + $0x70] sm:$0xff]
    %v283 = vld [vmem:[#allocation2 + $0x78] sm:$0xff]
    %284 = vmatprep.subr.mxu0 0.0
    %285 = vmatpush1.msra.mxu0 %v190
    %286 = vmatprep.subr.mxu0 0.0
    %287 = vmatpush1.msra.mxu0 %v195
    %288 = vmatprep.subr.mxu0 0.0
    %289 = vmatpush1.msra.mxu0 %v200
    %290 = vmatprep.subr.mxu0 0.0
    %291 = vmatpush1.msra.mxu0 %v205
    %292 = vmatprep.subr.mxu0 0.0
    %293 = vmatpush1.msra.mxu0 %v210
    %294 = vmatprep.subr.mxu0 0.0
    %295 = vmatpush1.msra.mxu0 %v215
    %296 = vmatprep.subr.mxu0 0.0
    %297 = vmatpush1.msra.mxu0 %v220
    %298 = vmatprep.subr.mxu0 0.0
    %299 = vmatpush1.msra.mxu0 %v225
    %300 = vmatprep.subr.mxu0 0.0
    %301 = vmatpush1.msra.mxu0 %v230
    %302 = vmatprep.subr.mxu0 0.0
    %303 = vmatpush1.msra.mxu0 %v235
    %304 = vmatprep.subr.mxu0 0.0
    %305 = vmatpush1.msra.mxu0 %v240
    %306 = vmatprep.subr.mxu0 0.0
    %307 = vmatpush1.msra.mxu0 %v245
    %308 = vmatprep.subr.mxu0 0.0
    %309 = vmatpush1.msra.mxu0 %v250
    %310 = vmatprep.subr.mxu0 0.0
    %311 = vmatpush1.msra.mxu0 %v255
    %312 = vmatprep.subr.mxu0 0.0
    %313 = vmatpush1.msra.mxu0 %v260
    %314 = vmatprep.subr.mxu0 0.0
    %315 = vmatpush1.msra.mxu0 %v265
    %316 = vmatprep.subr.mxu0 0.0
    %317 = vmatpush1.msra.mxu0 0.0
    %318 = vmatprep.subr.mxu0 0.0
    %319 = vmatpush1.msra.mxu0 0.0
    %320 = vmatprep.subr.mxu0 0.0
    %321 = vmatpush1.msra.mxu0 0.0
    %322 = vmatprep.subr.mxu0 0.0
    %323 = vmatpush1.msra.mxu0 0.0
    %324 = vmatprep.subr.mxu0 0.0
    %325 = vmatpush1.msra.mxu0 0.0
    %326 = vmatprep.subr.mxu0 0.0
    %327 = vmatpush1.msra.mxu0 0.0
    %328 = vmatprep.subr.mxu0 0.0
    %329 = vmatpush1.msra.mxu0 0.0
    %330 = vmatprep.subr.mxu0 0.0
    %331 = vmatpush1.msra.mxu0 0.0
    %332 = vmatprep.subr.mxu0 0.0
    %333 = vmatpush1.msra.mxu0 0.0
    %334 = vmatprep.subr.mxu0 0.0
    %335 = vmatpush1.msra.mxu0 0.0
    %336 = vmatprep.subr.mxu0 0.0
    %337 = vmatpush1.msra.mxu0 0.0
    %338 = vmatprep.subr.mxu0 0.0
    %339 = vmatpush1.msra.mxu0 0.0
    %340 = vmatprep.subr.mxu0 0.0
    %341 = vmatpush1.msra.mxu0 0.0
    %342 = vmatprep.subr.mxu0 0.0
    %343 = vmatpush1.msra.mxu0 0.0
    %344 = vmatprep.subr.mxu0 0.0
    %345 = vmatpush1.msra.mxu0 0.0
    %346 = vmatprep.subr.mxu0 0.0
    %347 = vmatpush1.msra.mxu0 0.0
    %348 = vmatprep.mubr.f32.mxu0 0.0
    %349 = vmatmul.mubr.f32.gmra.mrb[0].mxu0 %v41
    %v350 = vpop.f32.mrb[0].mxu0
    %v351 = vadd.f32 0.0, %v350
    %v352 = vpop.f32.mrb[0].mxu0
    %353 = vmatprep.mubr.f32.mxu0 0.0
    %354 = vmatmul.mubr.f32.gmra.mrb[0].mxu0 %v42
    %v355 = vpop.f32.mrb[0].mxu0
    %v356 = vadd.f32 0.0, %v355
    %v357 = vpop.f32.mrb[0].mxu0
    %358 = vmatprep.mubr.f32.mxu0 0.0
    %359 = vmatmul.mubr.f32.gmra.mrb[0].mxu0 %v43
    %v360 = vpop.f32.mrb[0].mxu0
    %v361 = vadd.f32 0.0, %v360
    %v362 = vpop.f32.mrb[0].mxu0
    %363 = vmatprep.mubr.f32.mxu0 0.0
    %364 = vmatmul.mubr.f32.gmra.mrb[0].mxu0 %v44
    %v365 = vpop.f32.mrb[0].mxu0
    %v366 = vadd.f32 0.0, %v365
    %v367 = vpop.f32.mrb[0].mxu0
    %368 = vmatprep.mubr.f32.mxu0 0.0
    %369 = vmatmul.mubr.f32.gmra.mrb[0].mxu0 %v45
    %v370 = vpop.f32.mrb[0].mxu0
    %v371 = vadd.f32 0.0, %v370
    %v372 = vpop.f32.mrb[0].mxu0
    %373 = vmatprep.mubr.f32.mxu0 0.0
    %374 = vmatmul.mubr.f32.gmra.mrb[0].mxu0 %v46
    %v375 = vpop.f32.mrb[0].mxu0
    %v376 = vadd.f32 0.0, %v375
    %v377 = vpop.f32.mrb[0].mxu0
    %378 = vmatprep.mubr.f32.mxu0 0.0
    %379 = vmatmul.mubr.f32.gmra.mrb[0].mxu0 %v47
    %v380 = vpop.f32.mrb[0].mxu0
    %v381 = vadd.f32 0.0, %v380
    %v382 = vpop.f32.mrb[0].mxu0
    %383 = vmatprep.mubr.f32.mxu0 0.0
    %384 = vmatmul.mubr.f32.gmra.mrb[0].mxu0 %v48
    %v385 = vpop.f32.mrb[0].mxu0
    %v386 = vadd.f32 0.0, %v385
    %v387 = vpop.f32.mrb[0].mxu0
    %388 = vmatprep.mubr.f32.mxu0 0.0
    %389 = vmatmul.mubr.f32.gmra.mrb[0].mxu0 %v49
    %v390 = vpop.f32.mrb[0].mxu0
    %v391 = vadd.f32 0.0, %v390
    %v392 = vpop.f32.mrb[0].mxu0
    %393 = vmatprep.mubr.f32.mxu0 0.0
    %394 = vmatmul.mubr.f32.gmra.mrb[0].mxu0 %v50
    %v395 = vpop.f32.mrb[0].mxu0
    %v396 = vadd.f32 0.0, %v395
    %v397 = vpop.f32.mrb[0].mxu0
    %398 = vmatprep.mubr.f32.mxu0 0.0
    %399 = vmatmul.mubr.f32.gmra.mrb[0].mxu0 %v51
    %v400 = vpop.f32.mrb[0].mxu0
    %v401 = vadd.f32 0.0, %v400
    %v402 = vpop.f32.mrb[0].mxu0
    %403 = vmatprep.mubr.f32.mxu0 0.0
    %404 = vmatmul.mubr.f32.gmra.mrb[0].mxu0 %v52
    %v405 = vpop.f32.mrb[0].mxu0
    %v406 = vadd.f32 0.0, %v405
    %v407 = vpop.f32.mrb[0].mxu0
    %408 = vmatprep.mubr.f32.mxu0 0.0
    %409 = vmatmul.mubr.f32.gmra.mrb[0].mxu0 %v53
    %v410 = vpop.f32.mrb[0].mxu0
    %v411 = vadd.f32 0.0, %v410
    %v412 = vpop.f32.mrb[0].mxu0
    %413 = vmatprep.mubr.f32.mxu0 0.0
    %414 = vmatmul.mubr.f32.gmra.mrb[0].mxu0 %v54
    %v415 = vpop.f32.mrb[0].mxu0
    %v416 = vadd.f32 0.0, %v415
    %v417 = vpop.f32.mrb[0].mxu0
    %418 = vmatprep.mubr.f32.mxu0 0.0
    %419 = vmatmul.mubr.f32.gmra.mrb[0].mxu0 %v55
    %v420 = vpop.f32.mrb[0].mxu0
    %v421 = vadd.f32 0.0, %v420
    %v422 = vpop.f32.mrb[0].mxu0
    %423 = vmatprep.mubr.f32.mxu0 0.0
    %424 = vmatmul.mubr.f32.gmra.mrb[0].mxu0 %v56
    %v425 = vpop.f32.mrb[0].mxu0
    %v426 = vadd.f32 0.0, %v425
    %v427 = vpop.f32.mrb[0].mxu0
    %428 = vdwg.mxu0
    %v429 = vadd.f32 %v268, %v351
    %v430 = vadd.f32 %v269, %v356
    %v431 = vadd.f32 %v270, %v361
    %v432 = vadd.f32 %v271, %v366
    %v433 = vadd.f32 %v272, %v371
    %v434 = vadd.f32 %v273, %v376
    %v435 = vadd.f32 %v274, %v381
    %v436 = vadd.f32 %v275, %v386
    %v437 = vadd.f32 %v276, %v391
    %v438 = vadd.f32 %v277, %v396
    %v439 = vadd.f32 %v278, %v401
    %v440 = vadd.f32 %v279, %v406
    %v441 = vadd.f32 %v280, %v411
    %v442 = vadd.f32 %v281, %v416
    %v443 = vadd.f32 %v282, %v421
    %v444 = vadd.f32 %v283, %v426
    %445 = vst [vmem:[#allocation2] sm:$0xff] %v429
    %446 = vst [vmem:[#allocation2 + $0x8] sm:$0xff] %v430
    %447 = vst [vmem:[#allocation2 + $0x10] sm:$0xff] %v431
    %448 = vst [vmem:[#allocation2 + $0x18] sm:$0xff] %v432
    %449 = vst [vmem:[#allocation2 + $0x20] sm:$0xff] %v433
    %450 = vst [vmem:[#allocation2 + $0x28] sm:$0xff] %v434
    %451 = vst [vmem:[#allocation2 + $0x30] sm:$0xff] %v435
    %452 = vst [vmem:[#allocation2 + $0x38] sm:$0xff] %v436
    %453 = vst [vmem:[#allocation2 + $0x40] sm:$0xff] %v437
    %454 = vst [vmem:[#allocation2 + $0x48] sm:$0xff] %v438
    %455 = vst [vmem:[#allocation2 + $0x50] sm:$0xff] %v439
    %456 = vst [vmem:[#allocation2 + $0x58] sm:$0xff] %v440
    %457 = vst [vmem:[#allocation2 + $0x60] sm:$0xff] %v441
    %458 = vst [vmem:[#allocation2 + $0x68] sm:$0xff] %v442
    %459 = vst [vmem:[#allocation2 + $0x70] sm:$0xff] %v443
    %460 = vst [vmem:[#allocation2 + $0x78] sm:$0xff] %v444
    // Predicated region
    $region26: #{tpu_custom_call.1} parent=1 // pred_check
      %p461 = pneg %p21
    $region27: #{tpu_custom_call.1} parent=1 // pred_check_branch
      %463 = sbr.rel (%p461) target = $region29
    $region28: #{tpu_custom_call.1} parent=1 // pred_region
      %v464 = vld [vmem:[#allocation2] sm:$0xff]
      %v465 = vld [vmem:[#allocation2 + $0x8] sm:$0xff]
      %v466 = vld [vmem:[#allocation2 + $0x10] sm:$0xff]
      %v467 = vld [vmem:[#allocation2 + $0x18] sm:$0xff]
      %v468 = vld [vmem:[#allocation2 + $0x20] sm:$0xff]
      %v469 = vld [vmem:[#allocation2 + $0x28] sm:$0xff]
      %v470 = vld [vmem:[#allocation2 + $0x30] sm:$0xff]
      %v471 = vld [vmem:[#allocation2 + $0x38] sm:$0xff]
      %v472 = vld [vmem:[#allocation2 + $0x40] sm:$0xff]
      %v473 = vld [vmem:[#allocation2 + $0x48] sm:$0xff]
      %v474 = vld [vmem:[#allocation2 + $0x50] sm:$0xff]
      %v475 = vld [vmem:[#allocation2 + $0x58] sm:$0xff]
      %v476 = vld [vmem:[#allocation2 + $0x60] sm:$0xff]
      %v477 = vld [vmem:[#allocation2 + $0x68] sm:$0xff]
      %v478 = vld [vmem:[#allocation2 + $0x70] sm:$0xff]
      %v479 = vld [vmem:[#allocation2 + $0x78] sm:$0xff]
      %v480 = vld [vmem:[%s3] sm:$0x1]
      %v482 = vlaneseq
      %v483 = vshrl.u32 %v482, 7
      %v484 = vsub.s32 0, %v483
      %v485 = vrot.slane %v480, %v484
      %v487 = vadd.f32 %v464, %v485
      %v488 = vadd.f32 %v465, %v485
      %v489 = vadd.f32 %v466, %v485
      %v490 = vadd.f32 %v467, %v485
      %v491 = vadd.f32 %v468, %v485
      %v492 = vadd.f32 %v469, %v485
      %v493 = vadd.f32 %v470, %v485
      %v494 = vadd.f32 %v471, %v485
      %v495 = vadd.f32 %v472, %v485
      %v496 = vadd.f32 %v473, %v485
      %v497 = vadd.f32 %v474, %v485
      %v498 = vadd.f32 %v475, %v485
      %v499 = vadd.f32 %v476, %v485
      %v500 = vadd.f32 %v477, %v485
      %v501 = vadd.f32 %v478, %v485
      %v502 = vadd.f32 %v479, %v485
      %vm503 = vcmp.gt.f32.partialorder %v487, 0.0
      %vm504 = vcmp.gt.f32.partialorder %v488, 0.0
      %vm505 = vcmp.gt.f32.partialorder %v489, 0.0
      %vm506 = vcmp.gt.f32.partialorder %v490, 0.0
      %vm507 = vcmp.gt.f32.partialorder %v491, 0.0
      %vm508 = vcmp.gt.f32.partialorder %v492, 0.0
      %vm509 = vcmp.gt.f32.partialorder %v493, 0.0
      %vm510 = vcmp.gt.f32.partialorder %v494, 0.0
      %vm511 = vcmp.gt.f32.partialorder %v495, 0.0
      %vm512 = vcmp.gt.f32.partialorder %v496, 0.0
      %vm513 = vcmp.gt.f32.partialorder %v497, 0.0
      %vm514 = vcmp.gt.f32.partialorder %v498, 0.0
      %vm515 = vcmp.gt.f32.partialorder %v499, 0.0
      %vm516 = vcmp.gt.f32.partialorder %v500, 0.0
      %vm517 = vcmp.gt.f32.partialorder %v501, 0.0
      %vm518 = vcmp.gt.f32.partialorder %v502, 0.0
      %v519 = vld [vmem:[%s4] sm:$0x1]
      %v521 = vlaneseq
      %v522 = vshrl.u32 %v521, 7
      %v523 = vsub.s32 0, %v522
      %v524 = vrot.slane %v519, %v523
      %v526 = vmul.f32 %v524, %v487
      %v527 = vmul.f32 %v524, %v488
      %v528 = vmul.f32 %v524, %v489
      %v529 = vmul.f32 %v524, %v490
      %v530 = vmul.f32 %v524, %v491
      %v531 = vmul.f32 %v524, %v492
      %v532 = vmul.f32 %v524, %v493
      %v533 = vmul.f32 %v524, %v494
      %v534 = vmul.f32 %v524, %v495
      %v535 = vmul.f32 %v524, %v496
      %v536 = vmul.f32 %v524, %v497
      %v537 = vmul.f32 %v524, %v498
      %v538 = vmul.f32 %v524, %v499
      %v539 = vmul.f32 %v524, %v500
      %v540 = vmul.f32 %v524, %v501
      %v541 = vmul.f32 %v524, %v502
      %v542 = vsel %vm503, %v487, %v526
      %v543 = vsel %vm504, %v488, %v527
      %v544 = vsel %vm505, %v489, %v528
      %v545 = vsel %vm506, %v490, %v529
      %v546 = vsel %vm507, %v491, %v530
      %v547 = vsel %vm508, %v492, %v531
      %v548 = vsel %vm509, %v493, %v532
      %v549 = vsel %vm510, %v494, %v533
      %v550 = vsel %vm511, %v495, %v534
      %v551 = vsel %vm512, %v496, %v535
      %v552 = vsel %vm513, %v497, %v536
      %v553 = vsel %vm514, %v498, %v537
      %v554 = vsel %vm515, %v499, %v538
      %v555 = vsel %vm516, %v500, %v539
      %v556 = vsel %vm517, %v501, %v540
      %v557 = vsel %vm518, %v502, %v541
      %558 = vst [vmem:[#allocation3] sm:$0xff] %v542
      %559 = vst [vmem:[#allocation3 + $0x8] sm:$0xff] %v543
      %560 = vst [vmem:[#allocation3 + $0x10] sm:$0xff] %v544
      %561 = vst [vmem:[#allocation3 + $0x18] sm:$0xff] %v545
      %562 = vst [vmem:[#allocation3 + $0x20] sm:$0xff] %v546
      %563 = vst [vmem:[#allocation3 + $0x28] sm:$0xff] %v547
      %564 = vst [vmem:[#allocation3 + $0x30] sm:$0xff] %v548
      %565 = vst [vmem:[#allocation3 + $0x38] sm:$0xff] %v549
      %566 = vst [vmem:[#allocation3 + $0x40] sm:$0xff] %v550
      %567 = vst [vmem:[#allocation3 + $0x48] sm:$0xff] %v551
      %568 = vst [vmem:[#allocation3 + $0x50] sm:$0xff] %v552
      %569 = vst [vmem:[#allocation3 + $0x58] sm:$0xff] %v553
      %570 = vst [vmem:[#allocation3 + $0x60] sm:$0xff] %v554
      %571 = vst [vmem:[#allocation3 + $0x68] sm:$0xff] %v555
      %572 = vst [vmem:[#allocation3 + $0x70] sm:$0xff] %v556
      %573 = vst [vmem:[#allocation3 + $0x78] sm:$0xff] %v557
    $region29: #{tpu_custom_call.1} parent=1 // pred_fallthru
      _
    // Predicated region
    $region30: #{tpu_custom_call.1} parent=1 // pred_check
      _
    $region31: #{tpu_custom_call.1} parent=1 // pred_check_branch
      %575 = sbr.rel (0) target = $region33
    $region32: #{tpu_custom_call.1} parent=1 // pred_region
      %s577 = ssub.s32 2048, 2048
      %578 = vsyncadd [#allocation4], %s577
      %s579 = sshll.u32 [#allocation3], 4
      %s580 = int_to_ptr.vmem [resolvable:$true] %s579
      %585 = dma.vmem_to_hbm [thread:$0]  %s580, 2048, %s5, [#allocation4], 128, 128, 8
    $region33: #{tpu_custom_call.1} parent=1 // pred_fallthru
      _
    // Predicated region
    $region34: #{tpu_custom_call.1} parent=1 // pred_check
      _
    $region35: #{tpu_custom_call.1} parent=1 // pred_check_branch
      %587 = sbr.rel (0) target = $region37
    $region36: #{tpu_custom_call.1} parent=1 // pred_region
      %588 = dma.done [#allocation4], 2048
    $region37: #{tpu_custom_call.1} parent=1 // pred_fallthru
      _
    %589 = vsyncpa [#allocation4], 1

</llo_original>
